<compile_context>
chip_gen: v7x
topology: tpu7x:2x2x1
jax: 0.10.0
libtpu: 0.0.40
codegen_flags: <defaults>
</compile_context>

<pallas_src>
import functools

import numpy as np
import jax
import jax.numpy as jnp
from jax import lax
from jax.experimental import pallas as pl
from jax.experimental.pallas import tpu as pltpu

EPS = 1e-6


def _attn_block_kernel(x_ref, vecs_ref, wqkv_ref, wp_ref, o_ref, *, exp_dtype):
    # x_ref block: (F, S, C) -> F frames of S spatial tokens, channels last.
    x = x_ref[...].astype(jnp.float32)                # (F, S, C) f32 (residual)
    F, S, C = x.shape

    vecs = vecs_ref[...]                              # (8, C) f32
    gamma, beta = vecs[0:1, :], vecs[1:2, :]
    bq, bk, bv, bp = vecs[2:3, :], vecs[3:4, :], vecs[4:5, :], vecs[5:6, :]

    # ---- GroupNorm (num_groups == 1), per frame, centered two-pass, f32 ----
    inv_n = 1.0 / float(S * C)
    mean = jnp.sum(x, axis=(1, 2), keepdims=True) * inv_n     # (F, 1, 1)
    xc = x - mean
    var = jnp.sum(xc * xc, axis=(1, 2), keepdims=True) * inv_n
    xn = xc * lax.rsqrt(var + EPS) * gamma + beta             # (F, S, C) f32

    # ---- fused pointwise q/k/v projection (bf16 operands, f32 accumulate) ----
    xn2 = xn.reshape(F * S, C).astype(jnp.bfloat16)
    qkv = jnp.dot(xn2, wqkv_ref[...],
                  preferred_element_type=jnp.float32)         # (F*S, 3C) f32
    # 1/sqrt(C) scale already folded into wq / bq by the wrapper.
    q = (qkv[:, 0 * C:1 * C] + bq).reshape(F, S, C).astype(jnp.bfloat16)
    k = (qkv[:, 1 * C:2 * C] + bk).reshape(F, S, C).astype(jnp.bfloat16)
    v = (qkv[:, 2 * C:3 * C] + bv).reshape(F, S, C).astype(jnp.bfloat16)

    # ---- spatial self-attention within each frame (batched over F) ----
    att = jnp.einsum("fqc,fkc->fqk", q, k,
                     preferred_element_type=jnp.float32)      # (F, S, S) f32
    amax = jnp.max(att, axis=-1, keepdims=True)               # (F, S, 1) f32
    # bf16 exp on v6e/v7x (EUP bf16), f32 on v5e.
    p = jnp.exp((att - amax).astype(exp_dtype))               # (F, S, S)
    l = jnp.sum(p, axis=-1, keepdims=True, dtype=jnp.float32)  # (F, S, 1) f32
    h = jnp.einsum("fqk,fkc->fqc", p.astype(jnp.bfloat16), v,
                   preferred_element_type=jnp.float32)        # (F, S, C) f32
    # Deferred softmax normalization: F*S*C multiplies instead of F*S*S.
    h = h * pl.reciprocal(l, approx=True)

    # ---- output projection + residual (f32) ----
    h2 = h.reshape(F * S, C).astype(jnp.bfloat16)
    ho = jnp.dot(h2, wp_ref[...], preferred_element_type=jnp.float32) + bp
    o_ref[...] = (x + ho.reshape(F, S, C)).astype(o_ref.dtype)


def _vmem_config():
    """Generation-aware (block_budget_bytes, vmem_limit_bytes, bf16_exp)."""
    kind = ""
    try:
        kind = jax.devices()[0].device_kind.lower()
    except Exception:
        pass
    vmem_bytes = None
    try:
        vmem_bytes = int(pltpu.get_tpu_info().vmem_capacity_bytes)
    except Exception:
        vmem_bytes = None
    if vmem_bytes is None:
        is_v7 = ("v7" in kind) or ("7x" in kind) or ("tpu7" in kind)
        vmem_bytes = (64 << 20) if is_v7 else (128 << 20)
    bf16_exp = "v5" not in kind  # v5e has no bf16 EUP path.
    if vmem_bytes <= (64 << 20):
        # v7x: 64 MiB physical -> keep limit <= 48 MiB, modest block budget.
        return 18 << 20, 48 << 20, bf16_exp
    # v5e / v6e: 128 MiB physical.
    return 56 << 20, 96 << 20, bf16_exp


def _frames_per_block(bt, s, c, budget_bytes, *, x_bytes=4, exp_bytes=2):
    """Largest divisor of bt whose per-block working set fits, with >= min(4, bt)
    grid steps so the grid shards across v7x's two TensorCores and DMAs overlap."""
    min_steps = min(4, bt)
    best = 1
    for f in range(1, bt + 1):
        if bt % f:
            continue
        if f > 1 and bt // f < min_steps:
            continue
        est = (4 * f * s * c * x_bytes           # in + out blocks, double buffered
               + f * s * s * (4 + exp_bytes)     # att (f32) + p (exp dtype)
               + f * s * c * (4 + 4              # xc, xn (f32)
                              + 3 * 4            # qkv (f32)
                              + 3 * 2            # q/k/v (bf16)
                              + 4 + 4))          # h, ho (f32)
        if est <= budget_bytes:
            best = f
    return best


def causal_attn_block_channels_last(xf, params, num_groups, *, out_dtype=None):
    """xf: (N, S, C) frames-major, channels-last (N = B*T, S = H*W), any float dtype.

    Use this entry point inside a network to avoid the NCTHW transposes and the
    f32 upcast at the HBM boundary (bf16 in / bf16 out is supported)."""
    # TODO(synk): num_groups > 1 (spatio-temporal normalization) not supported.
    assert num_groups == 1, "only the num_groups == 1 path is implemented"
    N, S, C = xf.shape
    out_dtype = out_dtype or xf.dtype

    block_budget, vmem_limit, bf16_exp = _vmem_config()
    exp_dtype = jnp.bfloat16 if bf16_exp else jnp.float32
    F = _frames_per_block(N, S, C, block_budget,
                          x_bytes=jnp.dtype(xf.dtype).itemsize,
                          exp_bytes=jnp.dtype(exp_dtype).itemsize)

    # Conv3d weight (C_out, C_in, 1, 1, 1) -> pointwise matmul; kernel does
    # row-vector @ weight, so pass the transpose (C_in, C_out).  Fuse q|k|v
    # into one (C, 3C) bf16 matrix and fold the 1/sqrt(C) scale into q.
    scale = float(C) ** -0.5
    wqkv = jnp.concatenate(
        [params["wq"].T * scale, params["wk"].T, params["wv"].T],
        axis=1).astype(jnp.bfloat16)                          # (C, 3C)
    wp = params["wp"].T.astype(jnp.bfloat16)                  # (C, C)

    # Pack gamma/beta/biases (f32) into one (8, C) array: one DMA, no frag.
    vecs = jnp.zeros((8, C), jnp.float32)
    vecs = vecs.at[0].set(params["gamma"].astype(jnp.float32))
    vecs = vecs.at[1].set(params["beta"].astype(jnp.float32))
    vecs = vecs.at[2].set(params["bq"].astype(jnp.float32) * scale)
    vecs = vecs.at[3].set(params["bk"].astype(jnp.float32))
    vecs = vecs.at[4].set(params["bv"].astype(jnp.float32))
    vecs = vecs.at[5].set(params["bp"].astype(jnp.float32))

    block = pl.BlockSpec((F, S, C), lambda i: (i, 0, 0))

    return pl.pallas_call(
        functools.partial(_attn_block_kernel, exp_dtype=exp_dtype),
        out_shape=jax.ShapeDtypeStruct((N, S, C), out_dtype),
        grid=(N // F,),
        in_specs=[
            block,                                        # x frames
            pl.BlockSpec((8, C), lambda i: (0, 0)),       # gamma/beta/biases
            pl.BlockSpec((C, 3 * C), lambda i: (0, 0)),   # fused qkv weight
            pl.BlockSpec((C, C), lambda i: (0, 0)),       # proj_out weight
        ],
        out_specs=block,
        compiler_params=pltpu.CompilerParams(
            dimension_semantics=("parallel",),
            vmem_limit_bytes=vmem_limit,
        ),
    )(xf, vecs, wqkv, wp)


def causal_attn_block(x, params, num_groups):
    """x: (B, C, T, H, W) (PyTorch NCTHW/NCDHW). Returns same shape/dtype."""
    B, C, T, H, W = x.shape
    xf = jnp.transpose(x, (0, 2, 3, 4, 1)).reshape(B * T, H * W, C)
    out = causal_attn_block_channels_last(xf, params, num_groups)
    return jnp.transpose(out.reshape(B, T, H, W, C), (0, 4, 1, 2, 3))


def ref_forward(x, p, num_groups, eps=EPS):
    """Pure-JAX f32 reference matching the PyTorch forward (num_groups == 1 path)."""
    B, C, T, H, W = x.shape
    S = H * W
    xb = jnp.transpose(x, (0, 2, 1, 3, 4)).reshape(B * T, C, S)   # time2batch
    G = num_groups
    xg = xb.reshape(B * T, G, (C // G) * S)
    mean = xg.mean(-1, keepdims=True)
    var = xg.var(-1, keepdims=True)                               # biased, like torch
    xn = ((xg - mean) / jnp.sqrt(var + eps)).reshape(B * T, C, S)
    xn = xn * p["gamma"][None, :, None] + p["beta"][None, :, None]

    def proj(hh, Wm, bb):
        return jnp.einsum("oc,bcs->bos", Wm, hh) + bb[None, :, None]

    q = proj(xn, p["wq"], p["bq"])
    k = proj(xn, p["wk"], p["bk"])
    v = proj(xn, p["wv"], p["bv"])
    att = jnp.einsum("bcs,bct->bst", q, k) * (C ** -0.5)          # (BT, Sq, Sk)
    w = jax.nn.softmax(att, axis=2)
    h = jnp.einsum("bcs,bts->bct", v, w)                          # (BT, C, Sq)
    h = jnp.einsum("oc,bct->bot", p["wp"], h) + p["bp"][None, :, None]
    h = jnp.transpose(h.reshape(B, T, C, H, W), (0, 2, 1, 3, 4))  # batch2time
    return x + h


if __name__ == "__main__":
    # NOTE: C=32 (<128 lanes) exercises masked stores / sub-tile lane slices that
    # production C>=128 shapes never hit; this is a correctness smoke test only.
    B, C, T, H, W = 2, 32, 2, 8, 8
    num_groups = 1

    key = jax.random.PRNGKey(0)
    ks = jax.random.split(key, 11)

    def w_init(k):
        return jax.random.normal(k, (C, C), jnp.float32) / np.sqrt(C)

    def b_init(k):
        return 0.1 * jax.random.normal(k, (C,), jnp.float32)

    params = dict(
        gamma=1.0 + 0.1 * jax.random.normal(ks[0], (C,), jnp.float32),
        beta=0.1 * jax.random.normal(ks[1], (C,), jnp.float32),
        wq=w_init(ks[2]), bq=b_init(ks[3]),
        wk=w_init(ks[4]), bk=b_init(ks[5]),
        wv=w_init(ks[6]), bv=b_init(ks[7]),
        wp=w_init(ks[8]), bp=b_init(ks[9]),
    )
    x = jax.random.normal(ks[10], (B, C, T, H, W), jnp.float32)

    out = causal_attn_block(x, params, num_groups)
    out = jax.block_until_ready(out)

    ref = ref_forward(x, params, num_groups)
    np.testing.assert_allclose(np.asarray(out), np.asarray(ref), rtol=5e-2, atol=5e-2)

    print("KERNEL_OK")
</pallas_src>

<mosaic_0001>
module attributes {stable_mosaic.version = 11 : i64} {
  func.func @_attn_block_kernel(%arg0: i32, %arg1: memref<1x64x32xf32, #tpu.memory_space<vmem>>, %arg2: memref<8x32xf32, #tpu.memory_space<vmem>>, %arg3: memref<32x96xbf16, #tpu.memory_space<vmem>>, %arg4: memref<32x32xbf16, #tpu.memory_space<vmem>>, %arg5: memref<1x64x32xf32, #tpu.memory_space<vmem>>) attributes {dimension_semantics = [#tpu.dimension_semantics<parallel>], iteration_bounds = array<i64: 4>, scalar_prefetch = 0 : i64, scratch_operands = 0 : i64, tpu.core_type = #tpu.core_type<tc>, window_params = [{transform_indices = @transform_0, window_bounds = array<i64: 1, 64, 32>}, {pipeline_mode = #tpu.pipeline_mode<synchronous>, transform_indices = @transform_1, window_bounds = array<i64: 8, 32>}, {pipeline_mode = #tpu.pipeline_mode<synchronous>, transform_indices = @transform_2, window_bounds = array<i64: 32, 96>}, {pipeline_mode = #tpu.pipeline_mode<synchronous>, transform_indices = @transform_3, window_bounds = array<i64: 32, 32>}, {transform_indices = @transform_4, window_bounds = array<i64: 1, 64, 32>}]} {
    %c0 = arith.constant 0 : index
    %c0_0 = arith.constant 0 : index
    %c0_1 = arith.constant 0 : index
    %0 = vector.load %arg1[%c0, %c0_0, %c0_1] : memref<1x64x32xf32, #tpu.memory_space<vmem>>, vector<1x64x32xf32>
    %c0_2 = arith.constant 0 : index
    %c0_3 = arith.constant 0 : index
    %1 = vector.load %arg2[%c0_2, %c0_3] : memref<8x32xf32, #tpu.memory_space<vmem>>, vector<8x32xf32>
    %2 = vector.extract_strided_slice %1 {offsets = [0, 0], sizes = [1, 32], strides = [1, 1]} : vector<8x32xf32> to vector<1x32xf32>
    %3 = vector.extract_strided_slice %1 {offsets = [1, 0], sizes = [1, 32], strides = [1, 1]} : vector<8x32xf32> to vector<1x32xf32>
    %4 = vector.extract_strided_slice %1 {offsets = [2, 0], sizes = [1, 32], strides = [1, 1]} : vector<8x32xf32> to vector<1x32xf32>
    %5 = vector.extract_strided_slice %1 {offsets = [3, 0], sizes = [1, 32], strides = [1, 1]} : vector<8x32xf32> to vector<1x32xf32>
    %6 = vector.extract_strided_slice %1 {offsets = [4, 0], sizes = [1, 32], strides = [1, 1]} : vector<8x32xf32> to vector<1x32xf32>
    %7 = vector.extract_strided_slice %1 {offsets = [5, 0], sizes = [1, 32], strides = [1, 1]} : vector<8x32xf32> to vector<1x32xf32>
    %cst = arith.constant dense<0.000000e+00> : vector<1xf32>
    %8 = vector.multi_reduction <add>, %0, %cst [1, 2] : vector<1x64x32xf32> to vector<1xf32>
    %9 = vector.shape_cast %8 : vector<1xf32> to vector<1x1x1xf32>
    %cst_4 = arith.constant 4.8828125E-4 : f32
    %10 = vector.broadcast %cst_4 : f32 to vector<1x1x1xf32>
    %11 = arith.mulf %9, %10 : vector<1x1x1xf32>
    %12 = vector.broadcast %11 : vector<1x1x1xf32> to vector<1x64x32xf32>
    %13 = arith.subf %0, %12 : vector<1x64x32xf32>
    %14 = arith.mulf %13, %13 : vector<1x64x32xf32>
    %cst_5 = arith.constant dense<0.000000e+00> : vector<1xf32>
    %15 = vector.multi_reduction <add>, %14, %cst_5 [1, 2] : vector<1x64x32xf32> to vector<1xf32>
    %16 = vector.shape_cast %15 : vector<1xf32> to vector<1x1x1xf32>
    %cst_6 = arith.constant 4.8828125E-4 : f32
    %17 = vector.broadcast %cst_6 : f32 to vector<1x1x1xf32>
    %18 = arith.mulf %16, %17 : vector<1x1x1xf32>
    %cst_7 = arith.constant 9.99999997E-7 : f32
    %19 = vector.broadcast %cst_7 : f32 to vector<1x1x1xf32>
    %20 = arith.addf %18, %19 : vector<1x1x1xf32>
    %21 = math.rsqrt %20 : vector<1x1x1xf32>
    %22 = vector.broadcast %21 : vector<1x1x1xf32> to vector<1x64x32xf32>
    %23 = arith.mulf %13, %22 : vector<1x64x32xf32>
    %24 = vector.shape_cast %2 : vector<1x32xf32> to vector<1x1x32xf32>
    %25 = vector.broadcast %24 : vector<1x1x32xf32> to vector<1x64x32xf32>
    %26 = arith.mulf %23, %25 : vector<1x64x32xf32>
    %27 = vector.shape_cast %3 : vector<1x32xf32> to vector<1x1x32xf32>
    %28 = vector.broadcast %27 : vector<1x1x32xf32> to vector<1x64x32xf32>
    %29 = arith.addf %26, %28 : vector<1x64x32xf32>
    %30 = vector.shape_cast %29 : vector<1x64x32xf32> to vector<64x32xf32>
    %31 = arith.truncf %30 : vector<64x32xf32> to vector<64x32xbf16>
    %c0_8 = arith.constant 0 : index
    %c0_9 = arith.constant 0 : index
    %32 = vector.load %arg3[%c0_8, %c0_9] : memref<32x96xbf16, #tpu.memory_space<vmem>>, vector<32x96xbf16>
    %cst_10 = arith.constant dense<0.000000e+00> : vector<64x96xf32>
    %33 = tpu.matmul %31, %32, %cst_10 {dimension_numbers = #tpu.dot_dimension_numbers<[1], [0], [0], [1], [0, 0, 1, 1], [], []>} : vector<64x32xbf16>, vector<32x96xbf16>, vector<64x96xf32> -> vector<64x96xf32>
    %34 = vector.extract_strided_slice %33 {offsets = [0, 0], sizes = [64, 32], strides = [1, 1]} : vector<64x96xf32> to vector<64x32xf32>
    %35 = vector.broadcast %4 : vector<1x32xf32> to vector<64x32xf32>
    %36 = arith.addf %34, %35 : vector<64x32xf32>
    %37 = vector.shape_cast %36 : vector<64x32xf32> to vector<1x64x32xf32>
    %38 = arith.truncf %37 : vector<1x64x32xf32> to vector<1x64x32xbf16>
    %39 = vector.extract_strided_slice %33 {offsets = [0, 32], sizes = [64, 32], strides = [1, 1]} : vector<64x96xf32> to vector<64x32xf32>
    %40 = vector.broadcast %5 : vector<1x32xf32> to vector<64x32xf32>
    %41 = arith.addf %39, %40 : vector<64x32xf32>
    %42 = vector.shape_cast %41 : vector<64x32xf32> to vector<1x64x32xf32>
    %43 = arith.truncf %42 : vector<1x64x32xf32> to vector<1x64x32xbf16>
    %44 = vector.extract_strided_slice %33 {offsets = [0, 64], sizes = [64, 32], strides = [1, 1]} : vector<64x96xf32> to vector<64x32xf32>
    %45 = vector.broadcast %6 : vector<1x32xf32> to vector<64x32xf32>
    %46 = arith.addf %44, %45 : vector<64x32xf32>
    %47 = vector.shape_cast %46 : vector<64x32xf32> to vector<1x64x32xf32>
    %48 = arith.truncf %47 : vector<1x64x32xf32> to vector<1x64x32xbf16>
    "tpu.trace_start"() <{level = 10 : i32, message = "fqc,fkc->fqk"}> : () -> ()
    %cst_11 = arith.constant dense<0.000000e+00> : vector<1x64x64xf32>
    %49 = tpu.matmul %38, %43, %cst_11 {dimension_numbers = #tpu.dot_dimension_numbers<[2], [2], [1], [1], [0, 0, 0, 1, 1, 1], [0], [0]>} : vector<1x64x32xbf16>, vector<1x64x32xbf16>, vector<1x64x64xf32> -> vector<1x64x64xf32>
    "tpu.trace_stop"() : () -> ()
    %cst_12 = arith.constant dense<0xFF800000> : vector<1x64xf32>
    %50 = vector.multi_reduction <maximumf>, %49, %cst_12 [2] : vector<1x64x64xf32> to vector<1x64xf32>
    %51 = vector.shape_cast %50 : vector<1x64xf32> to vector<1x64x1xf32>
    %52 = vector.broadcast %51 : vector<1x64x1xf32> to vector<1x64x64xf32>
    %53 = arith.subf %49, %52 : vector<1x64x64xf32>
    %54 = arith.truncf %53 : vector<1x64x64xf32> to vector<1x64x64xbf16>
    %55 = math.exp %54 : vector<1x64x64xbf16>
    %56 = arith.extf %55 : vector<1x64x64xbf16> to vector<1x64x64xf32>
    %cst_13 = arith.constant dense<0.000000e+00> : vector<1x64xf32>
    %57 = vector.multi_reduction <add>, %56, %cst_13 [2] : vector<1x64x64xf32> to vector<1x64xf32>
    %58 = vector.shape_cast %57 : vector<1x64xf32> to vector<1x64x1xf32>
    "tpu.trace_start"() <{level = 10 : i32, message = "fqk,fkc->fqc"}> : () -> ()
    %cst_14 = arith.constant dense<0.000000e+00> : vector<1x64x32xf32>
    %59 = tpu.matmul %55, %48, %cst_14 {dimension_numbers = #tpu.dot_dimension_numbers<[2], [1], [1], [2], [0, 0, 0, 1, 1, 2], [0], [0]>} : vector<1x64x64xbf16>, vector<1x64x32xbf16>, vector<1x64x32xf32> -> vector<1x64x32xf32>
    "tpu.trace_stop"() : () -> ()
    %60 = tpu.reciprocal %58 {approx = true} : vector<1x64x1xf32> -> vector<1x64x1xf32>
    %61 = vector.broadcast %60 : vector<1x64x1xf32> to vector<1x64x32xf32>
    %62 = arith.mulf %59, %61 : vector<1x64x32xf32>
    %63 = vector.shape_cast %62 : vector<1x64x32xf32> to vector<64x32xf32>
    %64 = arith.truncf %63 : vector<64x32xf32> to vector<64x32xbf16>
    %c0_15 = arith.constant 0 : index
    %c0_16 = arith.constant 0 : index
    %65 = vector.load %arg4[%c0_15, %c0_16] : memref<32x32xbf16, #tpu.memory_space<vmem>>, vector<32x32xbf16>
    %cst_17 = arith.constant dense<0.000000e+00> : vector<64x32xf32>
    %66 = tpu.matmul %64, %65, %cst_17 {dimension_numbers = #tpu.dot_dimension_numbers<[1], [0], [0], [1], [0, 0, 1, 1], [], []>} : vector<64x32xbf16>, vector<32x32xbf16>, vector<64x32xf32> -> vector<64x32xf32>
    %67 = vector.broadcast %7 : vector<1x32xf32> to vector<64x32xf32>
    %68 = arith.addf %66, %67 : vector<64x32xf32>
    %69 = vector.shape_cast %68 : vector<64x32xf32> to vector<1x64x32xf32>
    %70 = arith.addf %0, %69 : vector<1x64x32xf32>
    %c0_18 = arith.constant 0 : index
    %c0_19 = arith.constant 0 : index
    %c0_20 = arith.constant 0 : index
    %71 = vector.load %arg5[%c0_18, %c0_19, %c0_20] : memref<1x64x32xf32, #tpu.memory_space<vmem>>, vector<1x64x32xf32>
    tpu.vector_store %arg5[%c0_18, %c0_19, %c0_20], %70 {strides = array<i32>} : memref<1x64x32xf32, #tpu.memory_space<vmem>>, vector<1x64x32xf32>,
    return
  }
  func.func @transform_0(%arg0: i32) -> (i32, i32, i32) {
    %c0_i32 = arith.constant 0 : i32
    %c0_i32_0 = arith.constant 0 : i32
    %c0_i32_1 = arith.constant 0 : i32
    return %arg0, %c0_i32, %c0_i32_0 : i32, i32, i32
  }
  func.func @transform_1(%arg0: i32) -> (i32, i32) {
    %c0_i32 = arith.constant 0 : i32
    %c0_i32_0 = arith.constant 0 : i32
    %c0_i32_1 = arith.constant 0 : i32
    return %c0_i32, %c0_i32_0 : i32, i32
  }
  func.func @transform_2(%arg0: i32) -> (i32, i32) {
    %c0_i32 = arith.constant 0 : i32
    %c0_i32_0 = arith.constant 0 : i32
    %c0_i32_1 = arith.constant 0 : i32
    return %c0_i32, %c0_i32_0 : i32, i32
  }
  func.func @transform_3(%arg0: i32) -> (i32, i32) {
    %c0_i32 = arith.constant 0 : i32
    %c0_i32_0 = arith.constant 0 : i32
    %c0_i32_1 = arith.constant 0 : i32
    return %c0_i32, %c0_i32_0 : i32, i32
  }
  func.func @transform_4(%arg0: i32) -> (i32, i32, i32) {
    %c0_i32 = arith.constant 0 : i32
    %c0_i32_0 = arith.constant 0 : i32
    %c0_i32_1 = arith.constant 0 : i32
    return %arg0, %c0_i32, %c0_i32_0 : i32, i32, i32
  }
}

</mosaic_0001>

<llo_original>
// kernel: tpu_custom_call.1
$region0: #{tpu_custom_call.1}
  #allocation0 [shape = 'u32[]', space=smem, size = 0x4, offset = 0x4, fixed_abs, tag = 'smem constant byte address 0x4 - core index']
  #allocation1 [shape = 'u32[144,128]{1,0:T(1,128)}', space=vmem, size = 0x12000, scoped, tag = 'internal scratch']
  %s0 = inlined_call_operand.hbm [shape: f32[4,64,32], index: 0, kind: input, shape index: {}]
  %s1 = inlined_call_operand.hbm [shape: f32[8,32], index: 1, kind: input, shape index: {}]
  %s2 = inlined_call_operand.hbm [shape: bf16[32,96], index: 2, kind: input, shape index: {}]
  %s3 = inlined_call_operand.hbm [shape: bf16[32,32], index: 3, kind: input, shape index: {}]
  %s4 = inlined_call_operand.hbm [shape: f32[4,64,32], index: 4, kind: output, shape index: {}]
  %s5 = sld [smem:[#allocation0]]
  $region65: #{tpu_custom_call.1} parent=0
    _
  %s7 = ssub.s32 1, %s5
  %s8 = scalar_select 0, %s7, %s5
  $region1: #{tpu_custom_call.1} parent=0
    #allocation2 [shape = 'u8[65536]{0}', space=vmem, size = 0x10000, scoped, tag = 'input window, operand 0']
    #allocation3 [shape = 's32[2]{0}', space=sflag, size = 0x8, scoped, tag = 'scoped memory for tpu_custom_call.1']
    #allocation4 [shape = 's32[2]{0}', space=sflag, size = 0x8, scoped, tag = 'scoped memory for tpu_custom_call.1']
    #allocation5 [shape = 'u8[4096]{0}', space=vmem, size = 0x1000, scoped, tag = 'input window, operand 1, single buffered']
    #allocation6 [shape = 's32[1]{0}', space=sflag, size = 0x4, scoped, tag = 'scoped memory for tpu_custom_call.1']
    #allocation7 [shape = 'u8[8192]{0}', space=vmem, size = 0x2000, scoped, tag = 'input window, operand 2, single buffered']
    #allocation8 [shape = 'u8[8192]{0}', space=vmem, size = 0x2000, scoped, tag = 'input window, operand 3, single buffered']
    #allocation9 [shape = 's32[1]{0}', space=sflag, size = 0x4, scoped, tag = 'scoped memory for tpu_custom_call.1']
    #allocation10 [shape = 'u8[65536]{0}', space=vmem, size = 0x10000, scoped, tag = 'output window, operand 0']
    %9 = vsyncpa [#allocation3], 0
    %s10 = scalar_lea.sflag [#allocation3], 1
    %11 = vsyncpa %s10, 0
    %12 = vsyncpa [#allocation6], 0
    %13 = vsyncpa [#allocation9], 0
    %14 = vsyncpa [#allocation4], 0
    %s15 = scalar_lea.sflag [#allocation4], 1
    %16 = vsyncpa %s15, 0
    loop: start=0, step=1, limit=6
    $region2: #{tpu_custom_call.1} parent=1 // loop_pre_header
      _
    $region3: #{tpu_custom_call.1} parent=1 // loop_header
      %s18 = sphi 0, %s22
      %p19 = scmp.ge.s32.totalorder %s18, 6
      %s28 = sphi 0, %s30
      %s31 = sphi 0, %s28
      %s32 = sphi 0, %s31
      %s48 = sphi 0, %s32
      %s52 = sphi 0, %s52
      %s54 = sphi 0, %s52
      %s55 = sphi 0, %s54
      %s69 = sphi 0, %s55
      %s73 = sphi 0, %s73
      %s75 = sphi 0, %s73
      %s76 = sphi 0, %s75
      %s90 = sphi 0, %s76
      %s94 = sphi 0, %s94
      %s96 = sphi 0, %s94
      %s97 = sphi 0, %s96
      %s111 = sphi 0, %s97
      %s117 = sphi 0, %s119
      %s120 = sphi 0, %s117
      %s121 = sphi 0, %s120
      %s137 = sphi 0, %s121
    $region4: #{tpu_custom_call.1} parent=1 // loop_header_branch
      %21 = sbr.rel (%p19) target = $region8
    $region5: #{tpu_custom_call.1} parent=1 // loop_body
      %s23 = ssub.s32 %s18, 1
      %s24 = ssub.s32 %s18, 2
      %s25 = sadd.s32 %s18, 1
      %s26 = ssub.s32 %s18, %s25
      %p27 = scmp.eq.s32.totalorder %s26, 0
      %s29 = sadd.s32 %s28, 1
      %s30 = scalar_select %p27, %s28, %s29
      %p33 = pneg %p27
      %p34 = scmp.eq.s32.totalorder %s18, 3
      %p35 = por %p33, %p34
      %p36 = scmp.ne.s32.totalorder %s28, %s31
      %p37 = scmp.eq.s32.totalorder %s18, 0
      %p38 = por %p36, %p37
      %p39 = scmp.ne.s32.totalorder %s28, %s31
      %p40 = scmp.eq.s32.totalorder %s23, 3
      %p41 = por %p39, %p40
      %p42 = scmp.ne.s32.totalorder %s31, %s32
      %p43 = scmp.eq.s32.totalorder %s23, 0
      %p44 = por %p42, %p43
      %p45 = scmp.ne.s32.totalorder %s31, %s32
      %p46 = scmp.eq.s32.totalorder %s24, 3
      %p47 = por %p45, %p46
      %p49 = scmp.ne.s32.totalorder %s32, %s48
      %p50 = scmp.eq.s32.totalorder %s24, 0
      %p51 = por %p49, %p50
      %s53 = sadd.s32 %s52, 1
      %p56 = scmp.eq.s32.totalorder %s18, 3
      %p57 = scmp.ne.s32.totalorder %s52, %s54
      %p58 = scmp.eq.s32.totalorder %s18, 0
      %p59 = por %p57, %p58
      %p60 = scmp.ne.s32.totalorder %s52, %s54
      %p61 = scmp.eq.s32.totalorder %s23, 3
      %p62 = por %p60, %p61
      %p63 = scmp.ne.s32.totalorder %s54, %s55
      %p64 = scmp.eq.s32.totalorder %s23, 0
      %p65 = por %p63, %p64
      %p66 = scmp.ne.s32.totalorder %s54, %s55
      %p67 = scmp.eq.s32.totalorder %s24, 3
      %p68 = por %p66, %p67
      %p70 = scmp.ne.s32.totalorder %s55, %s69
      %p71 = scmp.eq.s32.totalorder %s24, 0
      %p72 = por %p70, %p71
      %s74 = sadd.s32 %s73, 1
      %p77 = scmp.eq.s32.totalorder %s18, 3
      %p78 = scmp.ne.s32.totalorder %s73, %s75
      %p79 = scmp.eq.s32.totalorder %s18, 0
      %p80 = por %p78, %p79
      %p81 = scmp.ne.s32.totalorder %s73, %s75
      %p82 = scmp.eq.s32.totalorder %s23, 3
      %p83 = por %p81, %p82
      %p84 = scmp.ne.s32.totalorder %s75, %s76
      %p85 = scmp.eq.s32.totalorder %s23, 0
      %p86 = por %p84, %p85
      %p87 = scmp.ne.s32.totalorder %s75, %s76
      %p88 = scmp.eq.s32.totalorder %s24, 3
      %p89 = por %p87, %p88
      %p91 = scmp.ne.s32.totalorder %s76, %s90
      %p92 = scmp.eq.s32.totalorder %s24, 0
      %p93 = por %p91, %p92
      %s95 = sadd.s32 %s94, 1
      %p98 = scmp.eq.s32.totalorder %s18, 3
      %p99 = scmp.ne.s32.totalorder %s94, %s96
      %p100 = scmp.eq.s32.totalorder %s18, 0
      %p101 = por %p99, %p100
      %p102 = scmp.ne.s32.totalorder %s94, %s96
      %p103 = scmp.eq.s32.totalorder %s23, 3
      %p104 = por %p102, %p103
      %p105 = scmp.ne.s32.totalorder %s96, %s97
      %p106 = scmp.eq.s32.totalorder %s23, 0
      %p107 = por %p105, %p106
      %p108 = scmp.ne.s32.totalorder %s96, %s97
      %p109 = scmp.eq.s32.totalorder %s24, 3
      %p110 = por %p108, %p109
      %p112 = scmp.ne.s32.totalorder %s97, %s111
      %p113 = scmp.eq.s32.totalorder %s24, 0
      %p114 = por %p112, %p113
      %s115 = ssub.s32 %s18, %s25
      %p116 = scmp.eq.s32.totalorder %s115, 0
      %s118 = sadd.s32 %s117, 1
      %s119 = scalar_select %p116, %s117, %s118
      %p122 = pneg %p116
      %p123 = scmp.eq.s32.totalorder %s18, 3
      %p124 = por %p122, %p123
      %p125 = scmp.ne.s32.totalorder %s117, %s120
      %p126 = scmp.eq.s32.totalorder %s18, 0
      %p127 = por %p125, %p126
      %p128 = scmp.ne.s32.totalorder %s117, %s120
      %p129 = scmp.eq.s32.totalorder %s23, 3
      %p130 = por %p128, %p129
      %p131 = scmp.ne.s32.totalorder %s120, %s121
      %p132 = scmp.eq.s32.totalorder %s23, 0
      %p133 = por %p131, %p132
      %p134 = scmp.ne.s32.totalorder %s120, %s121
      %p135 = scmp.eq.s32.totalorder %s24, 3
      %p136 = por %p134, %p135
      %p138 = scmp.ne.s32.totalorder %s121, %s137
      %p139 = scmp.eq.s32.totalorder %s24, 0
      %p140 = por %p138, %p139
      %p141 = scmp.le.s32.totalorder 1, %s18
      %p142 = scmp.lt.s32.totalorder %s18, 5
      %p143 = pnand %p141, %p142
      %p144 = pneg %p143
      // Predicated region
      $region9: #{tpu_custom_call.1} parent=5 // pred_check
        _
      $region10: #{tpu_custom_call.1} parent=5 // pred_check_branch
        %146 = sbr.rel (%p143) target = $region12
      $region11: #{tpu_custom_call.1} parent=5 // pred_region
        %s147 = ssub.s32 %s18, 1
        // Predicated region
        $region13: #{tpu_custom_call.1} parent=11 // pred_check
          %p148 = pneg %p65
        $region14: #{tpu_custom_call.1} parent=11 // pred_check_branch
          %150 = sbr.rel (%p148) target = $region16
        $region15: #{tpu_custom_call.1} parent=11 // pred_region
          %s152 = ssub.s32 128, 128
          %153 = vsyncadd [#allocation6], %s152
          %s155 = sshll.u32 [#allocation5], 4
          %s156 = int_to_ptr.vmem [resolvable:$true] %s155
          %158 = dma.hbm_to_vmem [thread:$0]  %s1, 128, %s156, [#allocation6]
        $region16: #{tpu_custom_call.1} parent=11 // pred_fallthru
          _
        // Predicated region
        $region17: #{tpu_custom_call.1} parent=11 // pred_check
          %p159 = pneg %p86
        $region18: #{tpu_custom_call.1} parent=11 // pred_check_branch
          %161 = sbr.rel (%p159) target = $region20
        $region19: #{tpu_custom_call.1} parent=11 // pred_region
          %s163 = ssub.s32 256, 256
          %164 = vsyncadd [#allocation6], %s163
          %s165 = sshll.u32 [#allocation7], 4
          %s166 = int_to_ptr.vmem [resolvable:$true] %s165
          %171 = dma.hbm_to_vmem [thread:$0]  %s2, 256, %s166, [#allocation6], 64, 64, 4
        $region20: #{tpu_custom_call.1} parent=11 // pred_fallthru
          _
        // Predicated region
        $region21: #{tpu_custom_call.1} parent=11 // pred_check
          %p172 = pneg %p107
        $region22: #{tpu_custom_call.1} parent=11 // pred_check_branch
          %174 = sbr.rel (%p172) target = $region24
        $region23: #{tpu_custom_call.1} parent=11 // pred_region
          %s176 = ssub.s32 256, 256
          %177 = vsyncadd [#allocation9], %s176
          %s178 = sshll.u32 [#allocation8], 4
          %s179 = int_to_ptr.vmem [resolvable:$true] %s178
          %184 = dma.hbm_to_vmem [thread:$0]  %s3, 256, %s179, [#allocation9], 64, 64, 4
        $region24: #{tpu_custom_call.1} parent=11 // pred_fallthru
          _
      $region12: #{tpu_custom_call.1} parent=5 // pred_fallthru
        _
      %p185 = scmp.lt.s32.totalorder %s18, 4
      // Predicated region
      $region25: #{tpu_custom_call.1} parent=5 // pred_check
        %p186 = pneg %p185
      $region26: #{tpu_custom_call.1} parent=5 // pred_check_branch
        %188 = sbr.rel (%p186) target = $region28
      $region27: #{tpu_custom_call.1} parent=5 // pred_region
        // Predicated region
        $region29: #{tpu_custom_call.1} parent=27 // pred_check
          %p189 = pneg %p38
        $region30: #{tpu_custom_call.1} parent=27 // pred_check_branch
          %191 = sbr.rel (%p189) target = $region32
        $region31: #{tpu_custom_call.1} parent=27 // pred_region
          %s192 = sand.u32 %s28, 1
          %s193 = scalar_lea.sflag [#allocation3], %s192
          %s194 = sand.u32 %s28, 1
          %s195 = smul.addr %s194, 64
          %s196 = scalar_lea.vmem [#allocation2], %s195
          %s198 = ssub.s32 1024, 1024
          %199 = vsyncadd %s193, %s198
          %s200 = smul.addr %s18, 8
          %s201 = smul.addr %s200, 128
          %s202 = scalar_lea.hbm %s0, %s201
          %s203 = sshll.u32 %s196, 4
          %s204 = int_to_ptr.vmem [resolvable:$true] %s203
          %209 = dma.hbm_to_vmem [thread:$0]  %s202, 1024, %s204, %s193, 128, 128, 8
        $region32: #{tpu_custom_call.1} parent=27 // pred_fallthru
          _
      $region28: #{tpu_custom_call.1} parent=5 // pred_fallthru
        _
      %p210 = scmp.le.s32.totalorder 1, %s18
      %p211 = scmp.lt.s32.totalorder %s18, 5
      %p212 = pnand %p210, %p211
      %p213 = pneg %p212
      // Predicated region
      $region33: #{tpu_custom_call.1} parent=5 // pred_check
        _
      $region34: #{tpu_custom_call.1} parent=5 // pred_check_branch
        %215 = sbr.rel (%p212) target = $region36
      $region35: #{tpu_custom_call.1} parent=5 // pred_region
        %s216 = ssub.s32 %s18, 1
        %s217 = sand.u32 %s31, 1
        %s218 = scalar_lea.sflag [#allocation3], %s217
        %s219 = sand.u32 %s31, 1
        %s220 = smul.addr %s219, 64
        %s221 = scalar_lea.vmem [#allocation2], %s220
        // Predicated region
        $region37: #{tpu_custom_call.1} parent=35 // pred_check
          %p222 = pneg %p44
        $region38: #{tpu_custom_call.1} parent=35 // pred_check_branch
          %224 = sbr.rel (%p222) target = $region40
        $region39: #{tpu_custom_call.1} parent=35 // pred_region
          %225 = dma.done %s218, 1024
        $region40: #{tpu_custom_call.1} parent=35 // pred_fallthru
          _
        // Predicated region
        $region41: #{tpu_custom_call.1} parent=35 // pred_check
          %p226 = pneg %p65
        $region42: #{tpu_custom_call.1} parent=35 // pred_check_branch
          %228 = sbr.rel (%p226) target = $region44
        $region43: #{tpu_custom_call.1} parent=35 // pred_region
          %229 = dma.done [#allocation6], 128
        $region44: #{tpu_custom_call.1} parent=35 // pred_fallthru
          _
        // Predicated region
        $region45: #{tpu_custom_call.1} parent=35 // pred_check
          %p230 = pneg %p86
        $region46: #{tpu_custom_call.1} parent=35 // pred_check_branch
          %232 = sbr.rel (%p230) target = $region48
        $region47: #{tpu_custom_call.1} parent=35 // pred_region
          %233 = dma.done [#allocation6], 256
        $region48: #{tpu_custom_call.1} parent=35 // pred_fallthru
          _
        // Predicated region
        $region49: #{tpu_custom_call.1} parent=35 // pred_check
          %p234 = pneg %p107
        $region50: #{tpu_custom_call.1} parent=35 // pred_check_branch
          %236 = sbr.rel (%p234) target = $region52
        $region51: #{tpu_custom_call.1} parent=35 // pred_region
          %237 = dma.done [#allocation9], 256
        $region52: #{tpu_custom_call.1} parent=35 // pred_fallthru
          _
        %s238 = sand.u32 %s31, 1
        %s239 = scalar_lea.sflag [#allocation3], %s238
        %s240 = sand.u32 %s31, 1
        %s241 = smul.addr %s240, 64
        %s242 = scalar_lea.vmem [#allocation2], %s241
        %p243 = pneg %p44
        %p244 = pneg %p41
        %p245 = pneg %p65
        %p246 = pneg %p62
        %p247 = pneg %p86
        %p248 = pneg %p83
        %p249 = pneg %p107
        %p250 = pneg %p104
        %p251 = pneg %p133
        %p252 = pneg %p130
        %s253 = sand.u32 %s120, 1
        %s254 = scalar_lea.sflag [#allocation4], %s253
        %s255 = sand.u32 %s120, 1
        %s256 = smul.addr %s255, 64
        %s257 = scalar_lea.vmem [#allocation10], %s256
        %v259 = vld [vmem:[%s221] sm:$0xff]
        %v260 = vld [vmem:[%s221 + $0x8] sm:$0xff]
        %v261 = vld [vmem:[%s221 + $0x10] sm:$0xff]
        %v262 = vld [vmem:[%s221 + $0x18] sm:$0xff]
        %v263 = vld [vmem:[%s221 + $0x20] sm:$0xff]
        %v264 = vld [vmem:[%s221 + $0x28] sm:$0xff]
        %v265 = vld [vmem:[%s221 + $0x30] sm:$0xff]
        %v266 = vld [vmem:[%s221 + $0x38] sm:$0xff]
        %v267 = vld [vmem:[#allocation5] sm:$0xff]
        %vm268 = vcmask 261120
        %v269 = vsel %vm268, %v259, 0.0
        %v270 = vsel %vm268, %v260, 0.0
        %v271 = vadd.f32 %v269, %v270
        %v272 = vsel %vm268, %v261, 0.0
        %v273 = vadd.f32 %v271, %v272
        %v274 = vsel %vm268, %v262, 0.0
        %v275 = vadd.f32 %v273, %v274
        %v276 = vsel %vm268, %v263, 0.0
        %v277 = vadd.f32 %v275, %v276
        %v278 = vsel %vm268, %v264, 0.0
        %v279 = vadd.f32 %v277, %v278
        %v280 = vsel %vm268, %v265, 0.0
        %v281 = vadd.f32 %v279, %v280
        %v282 = vsel %vm268, %v266, 0.0
        %v283 = vadd.f32 %v281, %v282
        %284 = vadd.xlane.f32.xlu0 %v283
        %v285 = vpop.xlane.xlu0 %284
        %v286 = vrot.slane %v285, 4
        %v287 = vadd.f32 %v285, %v286
        %v288 = vrot.slane %v287, 2
        %v289 = vadd.f32 %v287, %v288
        %v290 = vrot.slane %v289, 1
        %v291 = vadd.f32 %v289, %v290
        %v292 = vmul.f32 %v291, 0.00048828125
        %v293 = vsub.f32 %v259, %v292
        %v294 = vsub.f32 %v260, %v292
        %v295 = vsub.f32 %v261, %v292
        %v296 = vsub.f32 %v262, %v292
        %v297 = vsub.f32 %v263, %v292
        %v298 = vsub.f32 %v264, %v292
        %v299 = vsub.f32 %v265, %v292
        %v300 = vsub.f32 %v266, %v292
        %v301 = vmul.f32 %v293, %v293
        %v302 = vmul.f32 %v294, %v294
        %v303 = vmul.f32 %v295, %v295
        %v304 = vmul.f32 %v296, %v296
        %v305 = vmul.f32 %v297, %v297
        %v306 = vmul.f32 %v298, %v298
        %v307 = vmul.f32 %v299, %v299
        %v308 = vmul.f32 %v300, %v300
        %v309 = vsel %vm268, %v301, 0.0
        %v310 = vsel %vm268, %v302, 0.0
        %v311 = vadd.f32 %v309, %v310
        %v312 = vsel %vm268, %v303, 0.0
        %v313 = vadd.f32 %v311, %v312
        %v314 = vsel %vm268, %v304, 0.0
        %v315 = vadd.f32 %v313, %v314
        %v316 = vsel %vm268, %v305, 0.0
        %v317 = vadd.f32 %v315, %v316
        %v318 = vsel %vm268, %v306, 0.0
        %v319 = vadd.f32 %v317, %v318
        %v320 = vsel %vm268, %v307, 0.0
        %v321 = vadd.f32 %v319, %v320
        %v322 = vsel %vm268, %v308, 0.0
        %v323 = vadd.f32 %v321, %v322
        %324 = vadd.xlane.f32.xlu0 %v323
        %v325 = vpop.xlane.xlu0 %324
        %v326 = vrot.slane %v325, 4
        %v327 = vadd.f32 %v325, %v326
        %v328 = vrot.slane %v327, 2
        %v329 = vadd.f32 %v327, %v328
        %v330 = vrot.slane %v329, 1
        %v331 = vadd.f32 %v329, %v330
        %v332 = vmul.f32 %v331, 0.00048828125
        %v333 = vadd.f32 %v332, 1e-06
        %v334 = vrsqrt.pop %v333
        %v335 = vmul.f32 %v293, %v334
        %v336 = vmul.f32 %v294, %v334
        %v337 = vmul.f32 %v295, %v334
        %v338 = vmul.f32 %v296, %v334
        %v339 = vmul.f32 %v297, %v334
        %v340 = vmul.f32 %v298, %v334
        %v341 = vmul.f32 %v299, %v334
        %v342 = vmul.f32 %v300, %v334
        %v343 = vlaneseq
        %v344 = vshrl.u32 %v343, 7
        %v345 = vsub.s32 0, %v344
        %v346 = vrot.slane %v267, %v345
        %v347 = vmul.f32 %v335, %v346
        %v348 = vmul.f32 %v336, %v346
        %v349 = vmul.f32 %v337, %v346
        %v350 = vmul.f32 %v338, %v346
        %v351 = vmul.f32 %v339, %v346
        %v352 = vmul.f32 %v340, %v346
        %v353 = vmul.f32 %v341, %v346
        %v354 = vmul.f32 %v342, %v346
        %v355 = vlaneseq
        %v356 = vshrl.u32 %v355, 7
        %v357 = vsub.s32 1, %v356
        %v358 = vrot.slane %v267, %v357
        %v359 = vadd.f32 %v347, %v358
        %v360 = vadd.f32 %v348, %v358
        %v361 = vadd.f32 %v349, %v358
        %v362 = vadd.f32 %v350, %v358
        %v363 = vadd.f32 %v351, %v358
        %v364 = vadd.f32 %v352, %v358
        %v365 = vadd.f32 %v353, %v358
        %v366 = vadd.f32 %v354, %v358
        %v367 = vpack.c.bf16 %v360, %v359
        %v368 = vpack.c.bf16 %v362, %v361
        %v369 = vpack.c.bf16 %v364, %v363
        %v370 = vpack.c.bf16 %v366, %v365
        %v371 = vld [vmem:[#allocation7] sm:$0xf]
        %v372 = vld [vmem:[#allocation7 + $0x4] sm:$0xf]
        %v373 = vld [vmem:[#allocation7 + $0x8] sm:$0xf]
        %v374 = vld [vmem:[#allocation7 + $0xc] sm:$0xf]
        %v379 = vunpack.c.l.b16 %v371
        %v380 = vunpack.c.l.b16 %v372
        %v381 = vunpack.c.l.b16 %v373
        %v382 = vunpack.c.l.b16 %v374
        %v383 = vpack.c.b16 %v380, %v379
        %v384 = vpack.c.b16 %v382, %v381
        %v388 = vsel %vm268, %v367, 0
        %v391 = vsel %vm268, %v368, 0
        %v394 = vsel %vm268, %v369, 0
        %v397 = vsel %vm268, %v370, 0
        %399 = vmatprep.subr.bf16.mxu0 0
        %400 = vmatpush1.bf16.msra.mxu0 %v383
        %401 = vmatprep.subr.bf16.mxu0 0
        %402 = vmatpush1.bf16.msra.mxu0 %v384
        %403 = vmatprep.subr.bf16.mxu0 0
        %404 = vmatpush1.bf16.msra.mxu0 0
        %405 = vmatprep.subr.bf16.mxu0 0
        %406 = vmatpush1.bf16.msra.mxu0 0
        %407 = vmatprep.subr.bf16.mxu0 0
        %408 = vmatpush1.bf16.msra.mxu0 0
        %409 = vmatprep.subr.bf16.mxu0 0
        %410 = vmatpush1.bf16.msra.mxu0 0
        %411 = vmatprep.subr.bf16.mxu0 0
        %412 = vmatpush1.bf16.msra.mxu0 0
        %413 = vmatprep.subr.bf16.mxu0 0
        %414 = vmatpush1.bf16.msra.mxu0 0
        %415 = vmatprep.subr.bf16.mxu0 0
        %416 = vmatpush1.bf16.msra.mxu0 0
        %417 = vmatprep.subr.bf16.mxu0 0
        %418 = vmatpush1.bf16.msra.mxu0 0
        %419 = vmatprep.subr.bf16.mxu0 0
        %420 = vmatpush1.bf16.msra.mxu0 0
        %421 = vmatprep.subr.bf16.mxu0 0
        %422 = vmatpush1.bf16.msra.mxu0 0
        %423 = vmatprep.subr.bf16.mxu0 0
        %424 = vmatpush1.bf16.msra.mxu0 0
        %425 = vmatprep.subr.bf16.mxu0 0
        %426 = vmatpush1.bf16.msra.mxu0 0
        %427 = vmatprep.subr.bf16.mxu0 0
        %428 = vmatpush1.bf16.msra.mxu0 0
        %429 = vmatprep.subr.bf16.mxu0 0
        %430 = vmatpush1.bf16.msra.mxu0 0
        %431 = vmatprep.mubr.bf16.mxu0 0
        %432 = vmatmul.mubr.bf16.gmra.mrb[0].mxu0 %v388
        %v433 = vpop.f32.mrb[0].mxu0
        %v434 = vadd.f32 0.0, %v433
        %v435 = vpop.f32.mrb[0].mxu0
        %v436 = vpop.f32.mrb[0].mxu0
        %v437 = vadd.f32 0.0, %v436
        %v438 = vpop.f32.mrb[0].mxu0
        %439 = vmatprep.mubr.bf16.mxu0 0
        %440 = vmatmul.mubr.bf16.gmra.mrb[0].mxu0 %v391
        %v441 = vpop.f32.mrb[0].mxu0
        %v442 = vadd.f32 0.0, %v441
        %v443 = vpop.f32.mrb[0].mxu0
        %v444 = vpop.f32.mrb[0].mxu0
        %v445 = vadd.f32 0.0, %v444
        %v446 = vpop.f32.mrb[0].mxu0
        %447 = vmatprep.mubr.bf16.mxu0 0
        %448 = vmatmul.mubr.bf16.gmra.mrb[0].mxu0 %v394
        %v449 = vpop.f32.mrb[0].mxu0
        %v450 = vadd.f32 0.0, %v449
        %v451 = vpop.f32.mrb[0].mxu0
        %v452 = vpop.f32.mrb[0].mxu0
        %v453 = vadd.f32 0.0, %v452
        %v454 = vpop.f32.mrb[0].mxu0
        %455 = vmatprep.mubr.bf16.mxu0 0
        %456 = vmatmul.mubr.bf16.gmra.mrb[0].mxu0 %v397
        %v457 = vpop.f32.mrb[0].mxu0
        %v458 = vadd.f32 0.0, %v457
        %v459 = vpop.f32.mrb[0].mxu0
        %v460 = vpop.f32.mrb[0].mxu0
        %v461 = vadd.f32 0.0, %v460
        %v462 = vpop.f32.mrb[0].mxu0
        %463 = vdwg.mxu0
        %v464 = vlaneseq
        %v465 = vshrl.u32 %v464, 7
        %v466 = vsub.s32 2, %v465
        %v467 = vrot.slane %v267, %v466
        %v468 = vadd.f32 %v434, %v467
        %v469 = vadd.f32 %v437, %v467
        %v470 = vadd.f32 %v442, %v467
        %v471 = vadd.f32 %v445, %v467
        %v472 = vadd.f32 %v450, %v467
        %v473 = vadd.f32 %v453, %v467
        %v474 = vadd.f32 %v458, %v467
        %v475 = vadd.f32 %v461, %v467
        %v476 = vpack.c.bf16 %v469, %v468
        %v477 = vpack.c.bf16 %v471, %v470
        %v478 = vpack.c.bf16 %v473, %v472
        %v479 = vpack.c.bf16 %v475, %v474
        %v480 = vlaneseq
        %v481 = vshrl.u32 %v480, 7
        %v482 = vsub.s32 3, %v481
        %v483 = vrot.slane %v267, %v482
        %485 = vrot.lane.b32.xlu0 %v483, 32
        %v486 = vpop.permute.xlu0 %485
        %v488 = vadd.f32 %v434, %v486
        %v489 = vadd.f32 %v437, %v486
        %v490 = vadd.f32 %v442, %v486
        %v491 = vadd.f32 %v445, %v486
        %v492 = vadd.f32 %v450, %v486
        %v493 = vadd.f32 %v453, %v486
        %v494 = vadd.f32 %v458, %v486
        %v495 = vadd.f32 %v461, %v486
        %v496 = vpack.c.bf16 %v489, %v488
        %v497 = vpack.c.bf16 %v491, %v490
        %v498 = vpack.c.bf16 %v493, %v492
        %v499 = vpack.c.bf16 %v495, %v494
        %v500 = vlaneseq
        %v501 = vshrl.u32 %v500, 7
        %v502 = vsub.s32 4, %v501
        %v503 = vrot.slane %v267, %v502
        %505 = vrot.lane.b32.xlu0 %v503, 64
        %v506 = vpop.permute.xlu0 %505
        %v508 = vadd.f32 %v434, %v506
        %v509 = vadd.f32 %v437, %v506
        %v510 = vadd.f32 %v442, %v506
        %v511 = vadd.f32 %v445, %v506
        %v512 = vadd.f32 %v450, %v506
        %v513 = vadd.f32 %v453, %v506
        %v514 = vadd.f32 %v458, %v506
        %v515 = vadd.f32 %v461, %v506
        %v516 = vpack.c.bf16 %v509, %v508
        %v517 = vpack.c.bf16 %v511, %v510
        %v518 = vpack.c.bf16 %v513, %v512
        %v519 = vpack.c.bf16 %v515, %v514
        %524 = vrot.lane.b32.xlu0 %v496, 96
        %v525 = vpop.permute.xlu0 %524
        %526 = vrot.lane.b32.xlu0 %v497, 96
        %v527 = vpop.permute.xlu0 %526
        %528 = vrot.lane.b32.xlu0 %v498, 96
        %v529 = vpop.permute.xlu0 %528
        %530 = vrot.lane.b32.xlu0 %v499, 96
        %v531 = vpop.permute.xlu0 %530
        %v533 = vsel %vm268, %v476, 0
        %v536 = vsel %vm268, %v477, 0
        %v539 = vsel %vm268, %v478, 0
        %v542 = vsel %vm268, %v479, 0
        %v545 = vsel %vm268, %v525, 0
        %v548 = vsel %vm268, %v527, 0
        %v551 = vsel %vm268, %v529, 0
        %v554 = vsel %vm268, %v531, 0
        %556 = vmatprep.subr.bf16.mxu0 0
        %557 = vmatpush1.bf16.xpose.msra.mxu0 %v545
        %558 = vmatprep.subr.bf16.mxu0 0
        %559 = vmatpush1.bf16.xpose.msra.mxu0 %v548
        %560 = vmatprep.subr.bf16.mxu0 0
        %561 = vmatpush1.bf16.xpose.msra.mxu0 %v551
        %562 = vmatprep.subr.bf16.mxu0 0
        %563 = vmatpush1.bf16.xpose.msra.mxu0 %v554
        %564 = vmatprep.subr.bf16.mxu0 0
        %565 = vmatpush1.bf16.xpose.msra.mxu0 0
        %566 = vmatprep.subr.bf16.mxu0 0
        %567 = vmatpush1.bf16.xpose.msra.mxu0 0
        %568 = vmatprep.subr.bf16.mxu0 0
        %569 = vmatpush1.bf16.xpose.msra.mxu0 0
        %570 = vmatprep.subr.bf16.mxu0 0
        %571 = vmatpush1.bf16.xpose.msra.mxu0 0
        %572 = vmatprep.subr.bf16.mxu0 0
        %573 = vmatpush1.bf16.xpose.msra.mxu0 0
        %574 = vmatprep.subr.bf16.mxu0 0
        %575 = vmatpush1.bf16.xpose.msra.mxu0 0
        %576 = vmatprep.subr.bf16.mxu0 0
        %577 = vmatpush1.bf16.xpose.msra.mxu0 0
        %578 = vmatprep.subr.bf16.mxu0 0
        %579 = vmatpush1.bf16.xpose.msra.mxu0 0
        %580 = vmatprep.subr.bf16.mxu0 0
        %581 = vmatpush1.bf16.xpose.msra.mxu0 0
        %582 = vmatprep.subr.bf16.mxu0 0
        %583 = vmatpush1.bf16.xpose.msra.mxu0 0
        %584 = vmatprep.subr.bf16.mxu0 0
        %585 = vmatpush1.bf16.xpose.msra.mxu0 0
        %586 = vmatprep.subr.bf16.mxu0 0
        %587 = vmatpush1.bf16.xpose.msra.mxu0 0
        %588 = vmatprep.mubr.bf16.mxu0 0
        %589 = vmatmul.mubr.bf16.gmra.mrb[0].mxu0 %v533
        %v590 = vpop.f32.mrb[0].mxu0
        %v591 = vadd.f32 0.0, %v590
        %v592 = vpop.f32.mrb[0].mxu0
        %v593 = vpop.f32.mrb[0].mxu0
        %v594 = vadd.f32 0.0, %v593
        %v595 = vpop.f32.mrb[0].mxu0
        %596 = vmatprep.mubr.bf16.mxu0 0
        %597 = vmatmul.mubr.bf16.gmra.mrb[0].mxu0 %v536
        %v598 = vpop.f32.mrb[0].mxu0
        %v599 = vadd.f32 0.0, %v598
        %v600 = vpop.f32.mrb[0].mxu0
        %v601 = vpop.f32.mrb[0].mxu0
        %v602 = vadd.f32 0.0, %v601
        %v603 = vpop.f32.mrb[0].mxu0
        %604 = vmatprep.mubr.bf16.mxu0 0
        %605 = vmatmul.mubr.bf16.gmra.mrb[0].mxu0 %v539
        %v606 = vpop.f32.mrb[0].mxu0
        %v607 = vadd.f32 0.0, %v606
        %v608 = vpop.f32.mrb[0].mxu0
        %v609 = vpop.f32.mrb[0].mxu0
        %v610 = vadd.f32 0.0, %v609
        %v611 = vpop.f32.mrb[0].mxu0
        %612 = vmatprep.mubr.bf16.mxu0 0
        %613 = vmatmul.mubr.bf16.gmra.mrb[0].mxu0 %v542
        %v614 = vpop.f32.mrb[0].mxu0
        %v615 = vadd.f32 0.0, %v614
        %v616 = vpop.f32.mrb[0].mxu0
        %v617 = vpop.f32.mrb[0].mxu0
        %v618 = vadd.f32 0.0, %v617
        %v619 = vpop.f32.mrb[0].mxu0
        %620 = vdwg.mxu0
        %vm621 = vcmask 523264
        %v622 = vsel %vm621, %v591, -inf
        %623 = vmax.xlane.f32.xlu0 %v622
        %v624 = vpop.xlane.xlu0 %623
        %v625 = vsel %vm621, %v594, -inf
        %626 = vmax.xlane.f32.xlu0 %v625
        %v627 = vpop.xlane.xlu0 %626
        %v628 = vsel %vm621, %v599, -inf
        %629 = vmax.xlane.f32.xlu0 %v628
        %v630 = vpop.xlane.xlu0 %629
        %v631 = vsel %vm621, %v602, -inf
        %632 = vmax.xlane.f32.xlu0 %v631
        %v633 = vpop.xlane.xlu0 %632
        %v634 = vsel %vm621, %v607, -inf
        %635 = vmax.xlane.f32.xlu0 %v634
        %v636 = vpop.xlane.xlu0 %635
        %v637 = vsel %vm621, %v610, -inf
        %638 = vmax.xlane.f32.xlu0 %v637
        %v639 = vpop.xlane.xlu0 %638
        %v640 = vsel %vm621, %v615, -inf
        %641 = vmax.xlane.f32.xlu0 %v640
        %v642 = vpop.xlane.xlu0 %641
        %v643 = vsel %vm621, %v618, -inf
        %644 = vmax.xlane.f32.xlu0 %v643
        %v645 = vpop.xlane.xlu0 %644
        %v646 = vsub.f32 %v591, %v624
        %v647 = vsub.f32 %v594, %v627
        %v648 = vsub.f32 %v599, %v630
        %v649 = vsub.f32 %v602, %v633
        %v650 = vsub.f32 %v607, %v636
        %v651 = vsub.f32 %v610, %v639
        %v652 = vsub.f32 %v615, %v642
        %v653 = vsub.f32 %v618, %v645
        %v654 = vpack.c.bf16 %v647, %v646
        %v655 = vpack.c.bf16 %v649, %v648
        %v656 = vpack.c.bf16 %v651, %v650
        %v657 = vpack.c.bf16 %v653, %v652
        %v659 = vmul.bf16 %v654, 1069105081
        %v660 = vpow.bf16.pop %v659
        %v662 = vmul.bf16 %v655, 1069105081
        %v663 = vpow.bf16.pop %v662
        %v665 = vmul.bf16 %v656, 1069105081
        %v666 = vpow.bf16.pop %v665
        %v668 = vmul.bf16 %v657, 1069105081
        %v669 = vpow.bf16.pop %v668
        %v670 = vunpack.c.l.bf16 %v660
        %v671 = vunpack.c.h.bf16 %v660
        %v672 = vunpack.c.l.bf16 %v663
        %v673 = vunpack.c.h.bf16 %v663
        %v674 = vunpack.c.l.bf16 %v666
        %v675 = vunpack.c.h.bf16 %v666
        %v676 = vunpack.c.l.bf16 %v669
        %v677 = vunpack.c.h.bf16 %v669
        %v678 = vsel %vm621, %v670, 0.0
        %679 = vadd.xlane.f32.xlu0 %v678
        %v680 = vpop.xlane.xlu0 %679
        %v681 = vsel %vm621, %v671, 0.0
        %682 = vadd.xlane.f32.xlu0 %v681
        %v683 = vpop.xlane.xlu0 %682
        %v684 = vsel %vm621, %v672, 0.0
        %685 = vadd.xlane.f32.xlu0 %v684
        %v686 = vpop.xlane.xlu0 %685
        %v687 = vsel %vm621, %v673, 0.0
        %688 = vadd.xlane.f32.xlu0 %v687
        %v689 = vpop.xlane.xlu0 %688
        %v690 = vsel %vm621, %v674, 0.0
        %691 = vadd.xlane.f32.xlu0 %v690
        %v692 = vpop.xlane.xlu0 %691
        %v693 = vsel %vm621, %v675, 0.0
        %694 = vadd.xlane.f32.xlu0 %v693
        %v695 = vpop.xlane.xlu0 %694
        %v696 = vsel %vm621, %v676, 0.0
        %697 = vadd.xlane.f32.xlu0 %v696
        %v698 = vpop.xlane.xlu0 %697
        %v699 = vsel %vm621, %v677, 0.0
        %700 = vadd.xlane.f32.xlu0 %v699
        %v701 = vpop.xlane.xlu0 %700
        %706 = vrot.lane.b32.xlu0 %v516, 64
        %v707 = vpop.permute.xlu0 %706
        %708 = vrot.lane.b32.xlu0 %v517, 64
        %v709 = vpop.permute.xlu0 %708
        %710 = vrot.lane.b32.xlu0 %v518, 64
        %v711 = vpop.permute.xlu0 %710
        %712 = vrot.lane.b32.xlu0 %v519, 64
        %v713 = vpop.permute.xlu0 %712
        %v719 = vsel %vm621, %v660, 0
        %v722 = vsel %vm621, %v663, 0
        %v725 = vsel %vm621, %v666, 0
        %v728 = vsel %vm621, %v669, 0
        %730 = vmatprep.subr.bf16.mxu0 0
        %731 = vmatpush1.bf16.msra.mxu0 %v707
        %732 = vmatprep.subr.bf16.mxu0 0
        %733 = vmatpush1.bf16.msra.mxu0 %v709
        %734 = vmatprep.subr.bf16.mxu0 0
        %735 = vmatpush1.bf16.msra.mxu0 %v711
        %736 = vmatprep.subr.bf16.mxu0 0
        %737 = vmatpush1.bf16.msra.mxu0 %v713
        %738 = vmatprep.subr.bf16.mxu0 0
        %739 = vmatpush1.bf16.msra.mxu0 0
        %740 = vmatprep.subr.bf16.mxu0 0
        %741 = vmatpush1.bf16.msra.mxu0 0
        %742 = vmatprep.subr.bf16.mxu0 0
        %743 = vmatpush1.bf16.msra.mxu0 0
        %744 = vmatprep.subr.bf16.mxu0 0
        %745 = vmatpush1.bf16.msra.mxu0 0
        %746 = vmatprep.subr.bf16.mxu0 0
        %747 = vmatpush1.bf16.msra.mxu0 0
        %748 = vmatprep.subr.bf16.mxu0 0
        %749 = vmatpush1.bf16.msra.mxu0 0
        %750 = vmatprep.subr.bf16.mxu0 0
        %751 = vmatpush1.bf16.msra.mxu0 0
        %752 = vmatprep.subr.bf16.mxu0 0
        %753 = vmatpush1.bf16.msra.mxu0 0
        %754 = vmatprep.subr.bf16.mxu0 0
        %755 = vmatpush1.bf16.msra.mxu0 0
        %756 = vmatprep.subr.bf16.mxu0 0
        %757 = vmatpush1.bf16.msra.mxu0 0
        %758 = vmatprep.subr.bf16.mxu0 0
        %759 = vmatpush1.bf16.msra.mxu0 0
        %760 = vmatprep.subr.bf16.mxu0 0
        %761 = vmatpush1.bf16.msra.mxu0 0
        %762 = vmatprep.mubr.bf16.mxu0 0
        %763 = vmatmul.mubr.bf16.gmra.mrb[0].mxu0 %v719
        %v764 = vpop.f32.mrb[0].mxu0
        %v765 = vadd.f32 0.0, %v764
        %v766 = vpop.f32.mrb[0].mxu0
        %v767 = vpop.f32.mrb[0].mxu0
        %v768 = vadd.f32 0.0, %v767
        %v769 = vpop.f32.mrb[0].mxu0
        %770 = vmatprep.mubr.bf16.mxu0 0
        %771 = vmatmul.mubr.bf16.gmra.mrb[0].mxu0 %v722
        %v772 = vpop.f32.mrb[0].mxu0
        %v773 = vadd.f32 0.0, %v772
        %v774 = vpop.f32.mrb[0].mxu0
        %v775 = vpop.f32.mrb[0].mxu0
        %v776 = vadd.f32 0.0, %v775
        %v777 = vpop.f32.mrb[0].mxu0
        %778 = vmatprep.mubr.bf16.mxu0 0
        %779 = vmatmul.mubr.bf16.gmra.mrb[0].mxu0 %v725
        %v780 = vpop.f32.mrb[0].mxu0
        %v781 = vadd.f32 0.0, %v780
        %v782 = vpop.f32.mrb[0].mxu0
        %v783 = vpop.f32.mrb[0].mxu0
        %v784 = vadd.f32 0.0, %v783
        %v785 = vpop.f32.mrb[0].mxu0
        %786 = vmatprep.mubr.bf16.mxu0 0
        %787 = vmatmul.mubr.bf16.gmra.mrb[0].mxu0 %v728
        %v788 = vpop.f32.mrb[0].mxu0
        %v789 = vadd.f32 0.0, %v788
        %v790 = vpop.f32.mrb[0].mxu0
        %v791 = vpop.f32.mrb[0].mxu0
        %v792 = vadd.f32 0.0, %v791
        %v793 = vpop.f32.mrb[0].mxu0
        %794 = vdwg.mxu0
        %v795 = vrcp.pop %v680
        %v796 = vrcp.pop %v683
        %v797 = vrcp.pop %v686
        %v798 = vrcp.pop %v689
        %v799 = vrcp.pop %v692
        %v800 = vrcp.pop %v695
        %v801 = vrcp.pop %v698
        %v802 = vrcp.pop %v701
        %v803 = vmul.f32 %v765, %v795
        %v804 = vmul.f32 %v768, %v796
        %v805 = vmul.f32 %v773, %v797
        %v806 = vmul.f32 %v776, %v798
        %v807 = vmul.f32 %v781, %v799
        %v808 = vmul.f32 %v784, %v800
        %v809 = vmul.f32 %v789, %v801
        %v810 = vmul.f32 %v792, %v802
        %v811 = vpack.c.bf16 %v804, %v803
        %v812 = vpack.c.bf16 %v806, %v805
        %v813 = vpack.c.bf16 %v808, %v807
        %v814 = vpack.c.bf16 %v810, %v809
        %v815 = vld [vmem:[#allocation8] sm:$0xf]
        %v816 = vld [vmem:[#allocation8 + $0x4] sm:$0xf]
        %v817 = vld [vmem:[#allocation8 + $0x8] sm:$0xf]
        %v818 = vld [vmem:[#allocation8 + $0xc] sm:$0xf]
        %v819 = vlaneseq
        %v820 = vshrl.u32 %v819, 7
        %v821 = vsub.s32 5, %v820
        %v822 = vrot.slane %v267, %v821
        %v827 = vunpack.c.l.b16 %v815
        %v828 = vunpack.c.l.b16 %v816
        %v829 = vunpack.c.l.b16 %v817
        %v830 = vunpack.c.l.b16 %v818
        %v831 = vpack.c.b16 %v828, %v827
        %v832 = vpack.c.b16 %v830, %v829
        %v836 = vsel %vm268, %v811, 0
        %v839 = vsel %vm268, %v812, 0
        %v842 = vsel %vm268, %v813, 0
        %v845 = vsel %vm268, %v814, 0
        %847 = vmatprep.subr.bf16.mxu0 0
        %848 = vmatpush1.bf16.msra.mxu0 %v831
        %849 = vmatprep.subr.bf16.mxu0 0
        %850 = vmatpush1.bf16.msra.mxu0 %v832
        %851 = vmatprep.subr.bf16.mxu0 0
        %852 = vmatpush1.bf16.msra.mxu0 0
        %853 = vmatprep.subr.bf16.mxu0 0
        %854 = vmatpush1.bf16.msra.mxu0 0
        %855 = vmatprep.subr.bf16.mxu0 0
        %856 = vmatpush1.bf16.msra.mxu0 0
        %857 = vmatprep.subr.bf16.mxu0 0
        %858 = vmatpush1.bf16.msra.mxu0 0
        %859 = vmatprep.subr.bf16.mxu0 0
        %860 = vmatpush1.bf16.msra.mxu0 0
        %861 = vmatprep.subr.bf16.mxu0 0
        %862 = vmatpush1.bf16.msra.mxu0 0
        %863 = vmatprep.subr.bf16.mxu0 0
        %864 = vmatpush1.bf16.msra.mxu0 0
        %865 = vmatprep.subr.bf16.mxu0 0
        %866 = vmatpush1.bf16.msra.mxu0 0
        %867 = vmatprep.subr.bf16.mxu0 0
        %868 = vmatpush1.bf16.msra.mxu0 0
        %869 = vmatprep.subr.bf16.mxu0 0
        %870 = vmatpush1.bf16.msra.mxu0 0
        %871 = vmatprep.subr.bf16.mxu0 0
        %872 = vmatpush1.bf16.msra.mxu0 0
        %873 = vmatprep.subr.bf16.mxu0 0
        %874 = vmatpush1.bf16.msra.mxu0 0
        %875 = vmatprep.subr.bf16.mxu0 0
        %876 = vmatpush1.bf16.msra.mxu0 0
        %877 = vmatprep.subr.bf16.mxu0 0
        %878 = vmatpush1.bf16.msra.mxu0 0
        %879 = vmatprep.mubr.bf16.mxu0 0
        %880 = vmatmul.mubr.bf16.gmra.mrb[0].mxu0 %v836
        %v881 = vpop.f32.mrb[0].mxu0
        %v882 = vadd.f32 %v822, %v881
        %v883 = vpop.f32.mrb[0].mxu0
        %v884 = vpop.f32.mrb[0].mxu0
        %v885 = vadd.f32 %v822, %v884
        %v886 = vpop.f32.mrb[0].mxu0
        %887 = vmatprep.mubr.bf16.mxu0 0
        %888 = vmatmul.mubr.bf16.gmra.mrb[0].mxu0 %v839
        %v889 = vpop.f32.mrb[0].mxu0
        %v890 = vadd.f32 %v822, %v889
        %v891 = vpop.f32.mrb[0].mxu0
        %v892 = vpop.f32.mrb[0].mxu0
        %v893 = vadd.f32 %v822, %v892
        %v894 = vpop.f32.mrb[0].mxu0
        %895 = vmatprep.mubr.bf16.mxu0 0
        %896 = vmatmul.mubr.bf16.gmra.mrb[0].mxu0 %v842
        %v897 = vpop.f32.mrb[0].mxu0
        %v898 = vadd.f32 %v822, %v897
        %v899 = vpop.f32.mrb[0].mxu0
        %v900 = vpop.f32.mrb[0].mxu0
        %v901 = vadd.f32 %v822, %v900
        %v902 = vpop.f32.mrb[0].mxu0
        %903 = vmatprep.mubr.bf16.mxu0 0
        %904 = vmatmul.mubr.bf16.gmra.mrb[0].mxu0 %v845
        %v905 = vpop.f32.mrb[0].mxu0
        %v906 = vadd.f32 %v822, %v905
        %v907 = vpop.f32.mrb[0].mxu0
        %v908 = vpop.f32.mrb[0].mxu0
        %v909 = vadd.f32 %v822, %v908
        %v910 = vpop.f32.mrb[0].mxu0
        %911 = vdwg.mxu0
        %v912 = vadd.f32 %v259, %v882
        %v913 = vadd.f32 %v260, %v885
        %v914 = vadd.f32 %v261, %v890
        %v915 = vadd.f32 %v262, %v893
        %v916 = vadd.f32 %v263, %v898
        %v917 = vadd.f32 %v264, %v901
        %v918 = vadd.f32 %v265, %v906
        %v919 = vadd.f32 %v266, %v909
        %920 = vst.msk [vmem:[%s257] sm:$0xff] %vm268, %v912
        %921 = vst.msk [vmem:[%s257 + $0x8] sm:$0xff] %vm268, %v913
        %922 = vst.msk [vmem:[%s257 + $0x10] sm:$0xff] %vm268, %v914
        %923 = vst.msk [vmem:[%s257 + $0x18] sm:$0xff] %vm268, %v915
        %924 = vst.msk [vmem:[%s257 + $0x20] sm:$0xff] %vm268, %v916
        %925 = vst.msk [vmem:[%s257 + $0x28] sm:$0xff] %vm268, %v917
        %926 = vst.msk [vmem:[%s257 + $0x30] sm:$0xff] %vm268, %v918
        %927 = vst.msk [vmem:[%s257 + $0x38] sm:$0xff] %vm268, %v919
        %s928 = sand.u32 %s120, 1
        %s929 = scalar_lea.sflag [#allocation4], %s928
        %s930 = sand.u32 %s120, 1
        %s931 = smul.addr %s930, 64
        %s932 = scalar_lea.vmem [#allocation10], %s931
        // Predicated region
        $region53: #{tpu_custom_call.1} parent=35 // pred_check
          %p933 = pneg %p130
        $region54: #{tpu_custom_call.1} parent=35 // pred_check_branch
          %935 = sbr.rel (%p933) target = $region56
        $region55: #{tpu_custom_call.1} parent=35 // pred_region
          %s937 = ssub.s32 1024, 1024
          %938 = vsyncadd %s929, %s937
          %s939 = smul.addr %s23, 8
          %s940 = smul.addr %s939, 128
          %s941 = scalar_lea.hbm %s4, %s940
          %s942 = sshll.u32 %s932, 4
          %s943 = int_to_ptr.vmem [resolvable:$true] %s942
          %948 = dma.vmem_to_hbm [thread:$0]  %s943, 1024, %s941, %s929, 128, 128, 8
        $region56: #{tpu_custom_call.1} parent=35 // pred_fallthru
          _
      $region36: #{tpu_custom_call.1} parent=5 // pred_fallthru
        _
      %p949 = scmp.le.s32.totalorder 2, %s18
      // Predicated region
      $region57: #{tpu_custom_call.1} parent=5 // pred_check
        %p950 = pneg %p949
      $region58: #{tpu_custom_call.1} parent=5 // pred_check_branch
        %952 = sbr.rel (%p950) target = $region60
      $region59: #{tpu_custom_call.1} parent=5 // pred_region
        %s953 = ssub.s32 %s18, 2
        // Predicated region
        $region61: #{tpu_custom_call.1} parent=59 // pred_check
          %p954 = pneg %p136
        $region62: #{tpu_custom_call.1} parent=59 // pred_check_branch
          %956 = sbr.rel (%p954) target = $region64
        $region63: #{tpu_custom_call.1} parent=59 // pred_region
          %s957 = sand.u32 %s121, 1
          %s958 = scalar_lea.sflag [#allocation4], %s957
          %s959 = sand.u32 %s121, 1
          %s960 = smul.addr %s959, 64
          %s961 = scalar_lea.vmem [#allocation10], %s960
          %962 = dma.done %s958, 1024
        $region64: #{tpu_custom_call.1} parent=59 // pred_fallthru
          _
      $region60: #{tpu_custom_call.1} parent=5 // pred_fallthru
        _
    $region6: #{tpu_custom_call.1} parent=1 // loop_footer
      %s22 = sadd.s32 1, %s18
    $region7: #{tpu_custom_call.1} parent=1 // loop_footer_branch
      %17 = sbr.rel target = $region3
    $region8: #{tpu_custom_call.1} parent=1 // loop_exit
      _
    %963 = vsyncpa [#allocation3], 1
    %s964 = scalar_lea.sflag [#allocation3], 1
    %965 = vsyncpa %s964, 1
    %966 = vsyncpa [#allocation6], 1
    %967 = vsyncpa [#allocation9], 1
    %968 = vsyncpa [#allocation4], 1
    %s969 = scalar_lea.sflag [#allocation4], 1
    %970 = vsyncpa %s969, 1

</llo_original>
